<compile_context>
chip_gen: v5e
topology: v5e:2x2
jax: 0.10.0
libtpu: 0.0.40
codegen_flags: <defaults>
</compile_context>

<pallas_src>
import jax
import jax.numpy as jnp
from jax.experimental import pallas as pl
from jax.experimental.pallas import tpu as pltpu


def _maxpool_kernel(x_ref, o_ref):
    # x_ref: (rows, P, M), o_ref: (rows, M) — max over the pooling-window axis.
    o_ref[...] = jnp.max(x_ref[...], axis=1)


def _choose_row_tile(G, row_bytes, budget=1 * 1024 * 1024):
    """Largest legal row tile (== G, or a multiple-of-8 divisor of G) whose input
    block stays under `budget` bytes, leaving headroom for double-buffering in
    VMEM on every TPU generation (v5e/v6e/v7x)."""
    if G * row_bytes <= budget:
        return G
    divs = [t for t in range(8, G, 8) if G % t == 0]
    fitting = [t for t in divs if t * row_bytes <= budget]
    if fitting:
        return max(fitting)
    return min(divs) if divs else G


def undirectional_pooling(x, pooling_size):
    """MaxPool3d(kernel_size=[pooling_size, 1, 1]) forward. Accepts NCDHW or CDHW."""
    if x.ndim == 4:  # un-batched (C, D, H, W) input, like PyTorch's optional 4-D form
        return undirectional_pooling(x[None], pooling_size)[0]
    assert x.ndim == 5, "expected (N, C, D, H, W)"
    N, C, D, H, W = x.shape
    P = int(pooling_size)
    assert 1 <= P <= D, "pooling_size must be in [1, D]"
    D_out = D // P          # stride = kernel_size, padding 0, floor mode (PyTorch default)
    M = H * W
    G = N * C * D_out

    # Contiguous (free) reshape: one row per output (n, c, d_out); the P window is on
    # sublanes and H*W is flattened onto lanes.
    xr = x[:, :, :D_out * P].reshape(G, P, M)

    row_tile = _choose_row_tile(G, P * M * xr.dtype.itemsize)
    grid = (G // row_tile,)

    out = pl.pallas_call(
        _maxpool_kernel,
        out_shape=jax.ShapeDtypeStruct((G, M), x.dtype),
        grid=grid,
        in_specs=[pl.BlockSpec((row_tile, P, M), lambda i: (i, 0, 0))],
        out_specs=pl.BlockSpec((row_tile, M), lambda i: (i, 0)),
        compiler_params=pltpu.CompilerParams(
            dimension_semantics=("parallel",)),
    )(xr)
    return out.reshape(N, C, D_out, H, W)


if __name__ == "__main__":
    # Small deterministic example consistent with the module: (N, C, D, H, W).
    N, C, D, H, W = 2, 4, 8, 16, 16
    pooling_size = 2
    key = jax.random.PRNGKey(0)
    x = jax.random.normal(key, (N, C, D, H, W), jnp.float32)

    fwd = jax.jit(undirectional_pooling, static_argnums=1)
    out = fwd(x, pooling_size)
    jax.block_until_ready(out)

    # Pure-JAX reference of MaxPool3d([P, 1, 1]) semantics.
    D_out = D // pooling_size
    ref = jnp.max(
        x[:, :, :D_out * pooling_size].reshape(N, C, D_out, pooling_size, H, W),
        axis=3)

    assert out.shape == (N, C, D_out, H, W)
    assert bool(jnp.array_equal(out, ref))
    assert bool(jnp.all(jnp.isfinite(out)))
    print("KERNEL_OK")
</pallas_src>

<mosaic_0001>
module attributes {stable_mosaic.version = 11 : i64} {
  func.func @_maxpool_kernel(%arg0: i32, %arg1: memref<32x2x256xf32, #tpu.memory_space<vmem>>, %arg2: memref<32x256xf32, #tpu.memory_space<vmem>>) attributes {dimension_semantics = [#tpu.dimension_semantics<parallel>], iteration_bounds = array<i64: 1>, scalar_prefetch = 0 : i64, scratch_operands = 0 : i64, tpu.core_type = #tpu.core_type<tc>, window_params = [{transform_indices = @transform_0, window_bounds = array<i64: 32, 2, 256>}, {transform_indices = @transform_1, window_bounds = array<i64: 32, 256>}]} {
    %c0 = arith.constant 0 : index
    %c0_0 = arith.constant 0 : index
    %c0_1 = arith.constant 0 : index
    %0 = vector.load %arg1[%c0, %c0_0, %c0_1] : memref<32x2x256xf32, #tpu.memory_space<vmem>>, vector<32x2x256xf32>
    %cst = arith.constant dense<0xFF800000> : vector<32x256xf32>
    %1 = vector.multi_reduction <maximumf>, %0, %cst [1] : vector<32x2x256xf32> to vector<32x256xf32>
    %c0_2 = arith.constant 0 : index
    %c0_3 = arith.constant 0 : index
    %2 = vector.load %arg2[%c0_2, %c0_3] : memref<32x256xf32, #tpu.memory_space<vmem>>, vector<32x256xf32>
    tpu.vector_store %arg2[%c0_2, %c0_3], %1 {strides = array<i32>} : memref<32x256xf32, #tpu.memory_space<vmem>>, vector<32x256xf32>,
    return
  }
  func.func @transform_0(%arg0: i32) -> (i32, i32, i32) {
    %c0_i32 = arith.constant 0 : i32
    %c0_i32_0 = arith.constant 0 : i32
    %c0_i32_1 = arith.constant 0 : i32
    return %arg0, %c0_i32, %c0_i32_0 : i32, i32, i32
  }
  func.func @transform_1(%arg0: i32) -> (i32, i32) {
    %c0_i32 = arith.constant 0 : i32
    %c0_i32_0 = arith.constant 0 : i32
    return %arg0, %c0_i32 : i32, i32
  }
}

</mosaic_0001>

<llo_original>
// kernel: undirectional_pooling.1
$region0: #{undirectional_pooling.1}
  #allocation0 [shape = 'u32[]', space=smem, size = 0x4, offset = 0x4, fixed_abs, tag = 'smem constant byte address 0x4 - core index']
  #allocation1 [shape = 'u32[72,128]{1,0:T(1,128)}', space=vmem, size = 0x9000, scoped, tag = 'internal scratch']
  %s0 = inlined_call_operand.vmem [shape: f32[32,2,256], index: 0, kind: input, shape index: {}]
  %s1 = inlined_call_operand.vmem [shape: f32[32,256], index: 1, kind: output, shape index: {}]
  %s2 = sld [smem:[#allocation0]]
  $region14: #{undirectional_pooling.1} parent=0
    _
  %s4 = ssub.s32 1, %s2
  %s5 = scalar_select 0, %s4, %s2
  // Predicated region
  $region2: #{undirectional_pooling.1} parent=0 // pred_check
    _
  $region3: #{undirectional_pooling.1} parent=0 // pred_check_branch
    %7 = sbr.rel (0) target = $region5
  $region4: #{undirectional_pooling.1} parent=0 // pred_region
    _
  $region5: #{undirectional_pooling.1} parent=0 // pred_fallthru
    _
  %v8 = vld [vmem:[%s0] sm:$0xf]
  %v9 = vld [vmem:[%s0 + $0x4] sm:$0xf]
  %v10 = vld [vmem:[%s0 + $0x8] sm:$0xf]
  %v11 = vld [vmem:[%s0 + $0xc] sm:$0xf]
  %v12 = vld [vmem:[%s0 + $0x10] sm:$0xf]
  %v13 = vld [vmem:[%s0 + $0x14] sm:$0xf]
  %v14 = vld [vmem:[%s0 + $0x18] sm:$0xf]
  %v15 = vld [vmem:[%s0 + $0x1c] sm:$0xf]
  %v16 = vld [vmem:[%s0 + $0x20] sm:$0xf]
  %v17 = vld [vmem:[%s0 + $0x24] sm:$0xf]
  %v18 = vld [vmem:[%s0 + $0x28] sm:$0xf]
  %v19 = vld [vmem:[%s0 + $0x2c] sm:$0xf]
  %v20 = vld [vmem:[%s0 + $0x30] sm:$0xf]
  %v21 = vld [vmem:[%s0 + $0x34] sm:$0xf]
  %v22 = vld [vmem:[%s0 + $0x38] sm:$0xf]
  %v23 = vld [vmem:[%s0 + $0x3c] sm:$0xf]
  %v24 = vld [vmem:[%s0 + $0x40] sm:$0xf]
  %v25 = vld [vmem:[%s0 + $0x44] sm:$0xf]
  %v26 = vld [vmem:[%s0 + $0x48] sm:$0xf]
  %v27 = vld [vmem:[%s0 + $0x4c] sm:$0xf]
  %v28 = vld [vmem:[%s0 + $0x50] sm:$0xf]
  %v29 = vld [vmem:[%s0 + $0x54] sm:$0xf]
  %v30 = vld [vmem:[%s0 + $0x58] sm:$0xf]
  %v31 = vld [vmem:[%s0 + $0x5c] sm:$0xf]
  %v32 = vld [vmem:[%s0 + $0x60] sm:$0xf]
  %v33 = vld [vmem:[%s0 + $0x64] sm:$0xf]
  %v34 = vld [vmem:[%s0 + $0x68] sm:$0xf]
  %v35 = vld [vmem:[%s0 + $0x6c] sm:$0xf]
  %v36 = vld [vmem:[%s0 + $0x70] sm:$0xf]
  %v37 = vld [vmem:[%s0 + $0x74] sm:$0xf]
  %v38 = vld [vmem:[%s0 + $0x78] sm:$0xf]
  %v39 = vld [vmem:[%s0 + $0x7c] sm:$0xf]
  %72 = vst [vmem:[#allocation1] ss:$4 sm:$0xff] %v8
  %v73 = vld.sshfl [vmem:[#allocation1] sm:$0xff pattern:$0x73625140]
  %v74 = vld.sshfl [vmem:[#allocation1 + $0x8] sm:$0xff pattern:$0x73625140]
  %s75 = scalar_lea.vmem [#allocation1], 32
  %76 = vst [vmem:[%s75] ss:$4 sm:$0xff] %v9
  %v77 = vld.sshfl [vmem:[#allocation1 + $0x20] sm:$0xff pattern:$0x73625140]
  %v78 = vld.sshfl [vmem:[#allocation1 + $0x28] sm:$0xff pattern:$0x73625140]
  %79 = vst [vmem:[#allocation1] ss:$4 sm:$0xff] %v10
  %v80 = vld.sshfl [vmem:[#allocation1] sm:$0xff pattern:$0x73625140]
  %v81 = vld.sshfl [vmem:[#allocation1 + $0x8] sm:$0xff pattern:$0x73625140]
  %82 = vst [vmem:[%s75] ss:$4 sm:$0xff] %v11
  %v83 = vld.sshfl [vmem:[#allocation1 + $0x20] sm:$0xff pattern:$0x73625140]
  %v84 = vld.sshfl [vmem:[#allocation1 + $0x28] sm:$0xff pattern:$0x73625140]
  %85 = vst [vmem:[#allocation1] ss:$4 sm:$0xff] %v12
  %v86 = vld.sshfl [vmem:[#allocation1] sm:$0xff pattern:$0x73625140]
  %v87 = vld.sshfl [vmem:[#allocation1 + $0x8] sm:$0xff pattern:$0x73625140]
  %88 = vst [vmem:[%s75] ss:$4 sm:$0xff] %v13
  %v89 = vld.sshfl [vmem:[#allocation1 + $0x20] sm:$0xff pattern:$0x73625140]
  %v90 = vld.sshfl [vmem:[#allocation1 + $0x28] sm:$0xff pattern:$0x73625140]
  %91 = vst [vmem:[#allocation1] ss:$4 sm:$0xff] %v14
  %v92 = vld.sshfl [vmem:[#allocation1] sm:$0xff pattern:$0x73625140]
  %v93 = vld.sshfl [vmem:[#allocation1 + $0x8] sm:$0xff pattern:$0x73625140]
  %94 = vst [vmem:[%s75] ss:$4 sm:$0xff] %v15
  %v95 = vld.sshfl [vmem:[#allocation1 + $0x20] sm:$0xff pattern:$0x73625140]
  %v96 = vld.sshfl [vmem:[#allocation1 + $0x28] sm:$0xff pattern:$0x73625140]
  %97 = vst [vmem:[#allocation1] ss:$4 sm:$0xff] %v16
  %v98 = vld.sshfl [vmem:[#allocation1] sm:$0xff pattern:$0x73625140]
  %v99 = vld.sshfl [vmem:[#allocation1 + $0x8] sm:$0xff pattern:$0x73625140]
  %100 = vst [vmem:[%s75] ss:$4 sm:$0xff] %v17
  %v101 = vld.sshfl [vmem:[#allocation1 + $0x20] sm:$0xff pattern:$0x73625140]
  %v102 = vld.sshfl [vmem:[#allocation1 + $0x28] sm:$0xff pattern:$0x73625140]
  %103 = vst [vmem:[#allocation1] ss:$4 sm:$0xff] %v18
  %v104 = vld.sshfl [vmem:[#allocation1] sm:$0xff pattern:$0x73625140]
  %v105 = vld.sshfl [vmem:[#allocation1 + $0x8] sm:$0xff pattern:$0x73625140]
  %106 = vst [vmem:[%s75] ss:$4 sm:$0xff] %v19
  %v107 = vld.sshfl [vmem:[#allocation1 + $0x20] sm:$0xff pattern:$0x73625140]
  %v108 = vld.sshfl [vmem:[#allocation1 + $0x28] sm:$0xff pattern:$0x73625140]
  %109 = vst [vmem:[#allocation1] ss:$4 sm:$0xff] %v20
  %v110 = vld.sshfl [vmem:[#allocation1] sm:$0xff pattern:$0x73625140]
  %v111 = vld.sshfl [vmem:[#allocation1 + $0x8] sm:$0xff pattern:$0x73625140]
  %112 = vst [vmem:[%s75] ss:$4 sm:$0xff] %v21
  %v113 = vld.sshfl [vmem:[#allocation1 + $0x20] sm:$0xff pattern:$0x73625140]
  %v114 = vld.sshfl [vmem:[#allocation1 + $0x28] sm:$0xff pattern:$0x73625140]
  %115 = vst [vmem:[#allocation1] ss:$4 sm:$0xff] %v22
  %v116 = vld.sshfl [vmem:[#allocation1] sm:$0xff pattern:$0x73625140]
  %v117 = vld.sshfl [vmem:[#allocation1 + $0x8] sm:$0xff pattern:$0x73625140]
  %118 = vst [vmem:[%s75] ss:$4 sm:$0xff] %v23
  %v119 = vld.sshfl [vmem:[#allocation1 + $0x20] sm:$0xff pattern:$0x73625140]
  %v120 = vld.sshfl [vmem:[#allocation1 + $0x28] sm:$0xff pattern:$0x73625140]
  %121 = vst [vmem:[#allocation1] ss:$4 sm:$0xff] %v24
  %v122 = vld.sshfl [vmem:[#allocation1] sm:$0xff pattern:$0x73625140]
  %v123 = vld.sshfl [vmem:[#allocation1 + $0x8] sm:$0xff pattern:$0x73625140]
  %124 = vst [vmem:[%s75] ss:$4 sm:$0xff] %v25
  %v125 = vld.sshfl [vmem:[#allocation1 + $0x20] sm:$0xff pattern:$0x73625140]
  %v126 = vld.sshfl [vmem:[#allocation1 + $0x28] sm:$0xff pattern:$0x73625140]
  %127 = vst [vmem:[#allocation1] ss:$4 sm:$0xff] %v26
  %v128 = vld.sshfl [vmem:[#allocation1] sm:$0xff pattern:$0x73625140]
  %v129 = vld.sshfl [vmem:[#allocation1 + $0x8] sm:$0xff pattern:$0x73625140]
  %130 = vst [vmem:[%s75] ss:$4 sm:$0xff] %v27
  %v131 = vld.sshfl [vmem:[#allocation1 + $0x20] sm:$0xff pattern:$0x73625140]
  %v132 = vld.sshfl [vmem:[#allocation1 + $0x28] sm:$0xff pattern:$0x73625140]
  %133 = vst [vmem:[#allocation1] ss:$4 sm:$0xff] %v28
  %v134 = vld.sshfl [vmem:[#allocation1] sm:$0xff pattern:$0x73625140]
  %v135 = vld.sshfl [vmem:[#allocation1 + $0x8] sm:$0xff pattern:$0x73625140]
  %136 = vst [vmem:[%s75] ss:$4 sm:$0xff] %v29
  %v137 = vld.sshfl [vmem:[#allocation1 + $0x20] sm:$0xff pattern:$0x73625140]
  %v138 = vld.sshfl [vmem:[#allocation1 + $0x28] sm:$0xff pattern:$0x73625140]
  %139 = vst [vmem:[#allocation1] ss:$4 sm:$0xff] %v30
  %v140 = vld.sshfl [vmem:[#allocation1] sm:$0xff pattern:$0x73625140]
  %v141 = vld.sshfl [vmem:[#allocation1 + $0x8] sm:$0xff pattern:$0x73625140]
  %142 = vst [vmem:[%s75] ss:$4 sm:$0xff] %v31
  %v143 = vld.sshfl [vmem:[#allocation1 + $0x20] sm:$0xff pattern:$0x73625140]
  %v144 = vld.sshfl [vmem:[#allocation1 + $0x28] sm:$0xff pattern:$0x73625140]
  %145 = vst [vmem:[#allocation1] ss:$4 sm:$0xff] %v32
  %v146 = vld.sshfl [vmem:[#allocation1] sm:$0xff pattern:$0x73625140]
  %v147 = vld.sshfl [vmem:[#allocation1 + $0x8] sm:$0xff pattern:$0x73625140]
  %148 = vst [vmem:[%s75] ss:$4 sm:$0xff] %v33
  %v149 = vld.sshfl [vmem:[#allocation1 + $0x20] sm:$0xff pattern:$0x73625140]
  %v150 = vld.sshfl [vmem:[#allocation1 + $0x28] sm:$0xff pattern:$0x73625140]
  %151 = vst [vmem:[#allocation1] ss:$4 sm:$0xff] %v34
  %v152 = vld.sshfl [vmem:[#allocation1] sm:$0xff pattern:$0x73625140]
  %v153 = vld.sshfl [vmem:[#allocation1 + $0x8] sm:$0xff pattern:$0x73625140]
  %154 = vst [vmem:[%s75] ss:$4 sm:$0xff] %v35
  %v155 = vld.sshfl [vmem:[#allocation1 + $0x20] sm:$0xff pattern:$0x73625140]
  %v156 = vld.sshfl [vmem:[#allocation1 + $0x28] sm:$0xff pattern:$0x73625140]
  %157 = vst [vmem:[#allocation1] ss:$4 sm:$0xff] %v36
  %v158 = vld.sshfl [vmem:[#allocation1] sm:$0xff pattern:$0x73625140]
  %v159 = vld.sshfl [vmem:[#allocation1 + $0x8] sm:$0xff pattern:$0x73625140]
  %160 = vst [vmem:[%s75] ss:$4 sm:$0xff] %v37
  %v161 = vld.sshfl [vmem:[#allocation1 + $0x20] sm:$0xff pattern:$0x73625140]
  %v162 = vld.sshfl [vmem:[#allocation1 + $0x28] sm:$0xff pattern:$0x73625140]
  %163 = vst [vmem:[#allocation1] ss:$4 sm:$0xff] %v38
  %v164 = vld.sshfl [vmem:[#allocation1] sm:$0xff pattern:$0x73625140]
  %v165 = vld.sshfl [vmem:[#allocation1 + $0x8] sm:$0xff pattern:$0x73625140]
  %166 = vst [vmem:[%s75] ss:$4 sm:$0xff] %v39
  %v167 = vld.sshfl [vmem:[#allocation1 + $0x20] sm:$0xff pattern:$0x73625140]
  %v168 = vld.sshfl [vmem:[#allocation1 + $0x28] sm:$0xff pattern:$0x73625140]
  %vm233 = vcmask 1041408
  %v234 = vsel %vm233, %v73, -inf
  %v235 = vrot.slane %v234, 4
  %v236 = vmax.f32 %v234, %v235
  %v237 = vrot.slane %v236, 2
  %v238 = vmax.f32 %v236, %v237
  %v239 = vrot.slane %v238, 1
  %v240 = vmax.f32 %v238, %v239
  %v241 = vsel %vm233, %v74, -inf
  %v242 = vrot.slane %v241, 4
  %v243 = vmax.f32 %v241, %v242
  %v244 = vrot.slane %v243, 2
  %v245 = vmax.f32 %v243, %v244
  %v246 = vrot.slane %v245, 1
  %v247 = vmax.f32 %v245, %v246
  %v248 = vsel %vm233, %v77, -inf
  %v249 = vrot.slane %v248, 4
  %v250 = vmax.f32 %v248, %v249
  %v251 = vrot.slane %v250, 2
  %v252 = vmax.f32 %v250, %v251
  %v253 = vrot.slane %v252, 1
  %v254 = vmax.f32 %v252, %v253
  %v255 = vsel %vm233, %v78, -inf
  %v256 = vrot.slane %v255, 4
  %v257 = vmax.f32 %v255, %v256
  %v258 = vrot.slane %v257, 2
  %v259 = vmax.f32 %v257, %v258
  %v260 = vrot.slane %v259, 1
  %v261 = vmax.f32 %v259, %v260
  %v262 = vsel %vm233, %v80, -inf
  %v263 = vrot.slane %v262, 4
  %v264 = vmax.f32 %v262, %v263
  %v265 = vrot.slane %v264, 2
  %v266 = vmax.f32 %v264, %v265
  %v267 = vrot.slane %v266, 1
  %v268 = vmax.f32 %v266, %v267
  %v269 = vsel %vm233, %v81, -inf
  %v270 = vrot.slane %v269, 4
  %v271 = vmax.f32 %v269, %v270
  %v272 = vrot.slane %v271, 2
  %v273 = vmax.f32 %v271, %v272
  %v274 = vrot.slane %v273, 1
  %v275 = vmax.f32 %v273, %v274
  %v276 = vsel %vm233, %v83, -inf
  %v277 = vrot.slane %v276, 4
  %v278 = vmax.f32 %v276, %v277
  %v279 = vrot.slane %v278, 2
  %v280 = vmax.f32 %v278, %v279
  %v281 = vrot.slane %v280, 1
  %v282 = vmax.f32 %v280, %v281
  %v283 = vsel %vm233, %v84, -inf
  %v284 = vrot.slane %v283, 4
  %v285 = vmax.f32 %v283, %v284
  %v286 = vrot.slane %v285, 2
  %v287 = vmax.f32 %v285, %v286
  %v288 = vrot.slane %v287, 1
  %v289 = vmax.f32 %v287, %v288
  %v290 = vsel %vm233, %v86, -inf
  %v291 = vrot.slane %v290, 4
  %v292 = vmax.f32 %v290, %v291
  %v293 = vrot.slane %v292, 2
  %v294 = vmax.f32 %v292, %v293
  %v295 = vrot.slane %v294, 1
  %v296 = vmax.f32 %v294, %v295
  %v297 = vsel %vm233, %v87, -inf
  %v298 = vrot.slane %v297, 4
  %v299 = vmax.f32 %v297, %v298
  %v300 = vrot.slane %v299, 2
  %v301 = vmax.f32 %v299, %v300
  %v302 = vrot.slane %v301, 1
  %v303 = vmax.f32 %v301, %v302
  %v304 = vsel %vm233, %v89, -inf
  %v305 = vrot.slane %v304, 4
  %v306 = vmax.f32 %v304, %v305
  %v307 = vrot.slane %v306, 2
  %v308 = vmax.f32 %v306, %v307
  %v309 = vrot.slane %v308, 1
  %v310 = vmax.f32 %v308, %v309
  %v311 = vsel %vm233, %v90, -inf
  %v312 = vrot.slane %v311, 4
  %v313 = vmax.f32 %v311, %v312
  %v314 = vrot.slane %v313, 2
  %v315 = vmax.f32 %v313, %v314
  %v316 = vrot.slane %v315, 1
  %v317 = vmax.f32 %v315, %v316
  %v318 = vsel %vm233, %v92, -inf
  %v319 = vrot.slane %v318, 4
  %v320 = vmax.f32 %v318, %v319
  %v321 = vrot.slane %v320, 2
  %v322 = vmax.f32 %v320, %v321
  %v323 = vrot.slane %v322, 1
  %v324 = vmax.f32 %v322, %v323
  %v325 = vsel %vm233, %v93, -inf
  %v326 = vrot.slane %v325, 4
  %v327 = vmax.f32 %v325, %v326
  %v328 = vrot.slane %v327, 2
  %v329 = vmax.f32 %v327, %v328
  %v330 = vrot.slane %v329, 1
  %v331 = vmax.f32 %v329, %v330
  %v332 = vsel %vm233, %v95, -inf
  %v333 = vrot.slane %v332, 4
  %v334 = vmax.f32 %v332, %v333
  %v335 = vrot.slane %v334, 2
  %v336 = vmax.f32 %v334, %v335
  %v337 = vrot.slane %v336, 1
  %v338 = vmax.f32 %v336, %v337
  %v339 = vsel %vm233, %v96, -inf
  %v340 = vrot.slane %v339, 4
  %v341 = vmax.f32 %v339, %v340
  %v342 = vrot.slane %v341, 2
  %v343 = vmax.f32 %v341, %v342
  %v344 = vrot.slane %v343, 1
  %v345 = vmax.f32 %v343, %v344
  %v346 = vsel %vm233, %v98, -inf
  %v347 = vrot.slane %v346, 4
  %v348 = vmax.f32 %v346, %v347
  %v349 = vrot.slane %v348, 2
  %v350 = vmax.f32 %v348, %v349
  %v351 = vrot.slane %v350, 1
  %v352 = vmax.f32 %v350, %v351
  %v353 = vsel %vm233, %v99, -inf
  %v354 = vrot.slane %v353, 4
  %v355 = vmax.f32 %v353, %v354
  %v356 = vrot.slane %v355, 2
  %v357 = vmax.f32 %v355, %v356
  %v358 = vrot.slane %v357, 1
  %v359 = vmax.f32 %v357, %v358
  %v360 = vsel %vm233, %v101, -inf
  %v361 = vrot.slane %v360, 4
  %v362 = vmax.f32 %v360, %v361
  %v363 = vrot.slane %v362, 2
  %v364 = vmax.f32 %v362, %v363
  %v365 = vrot.slane %v364, 1
  %v366 = vmax.f32 %v364, %v365
  %v367 = vsel %vm233, %v102, -inf
  %v368 = vrot.slane %v367, 4
  %v369 = vmax.f32 %v367, %v368
  %v370 = vrot.slane %v369, 2
  %v371 = vmax.f32 %v369, %v370
  %v372 = vrot.slane %v371, 1
  %v373 = vmax.f32 %v371, %v372
  %v374 = vsel %vm233, %v104, -inf
  %v375 = vrot.slane %v374, 4
  %v376 = vmax.f32 %v374, %v375
  %v377 = vrot.slane %v376, 2
  %v378 = vmax.f32 %v376, %v377
  %v379 = vrot.slane %v378, 1
  %v380 = vmax.f32 %v378, %v379
  %v381 = vsel %vm233, %v105, -inf
  %v382 = vrot.slane %v381, 4
  %v383 = vmax.f32 %v381, %v382
  %v384 = vrot.slane %v383, 2
  %v385 = vmax.f32 %v383, %v384
  %v386 = vrot.slane %v385, 1
  %v387 = vmax.f32 %v385, %v386
  %v388 = vsel %vm233, %v107, -inf
  %v389 = vrot.slane %v388, 4
  %v390 = vmax.f32 %v388, %v389
  %v391 = vrot.slane %v390, 2
  %v392 = vmax.f32 %v390, %v391
  %v393 = vrot.slane %v392, 1
  %v394 = vmax.f32 %v392, %v393
  %v395 = vsel %vm233, %v108, -inf
  %v396 = vrot.slane %v395, 4
  %v397 = vmax.f32 %v395, %v396
  %v398 = vrot.slane %v397, 2
  %v399 = vmax.f32 %v397, %v398
  %v400 = vrot.slane %v399, 1
  %v401 = vmax.f32 %v399, %v400
  %v402 = vsel %vm233, %v110, -inf
  %v403 = vrot.slane %v402, 4
  %v404 = vmax.f32 %v402, %v403
  %v405 = vrot.slane %v404, 2
  %v406 = vmax.f32 %v404, %v405
  %v407 = vrot.slane %v406, 1
  %v408 = vmax.f32 %v406, %v407
  %v409 = vsel %vm233, %v111, -inf
  %v410 = vrot.slane %v409, 4
  %v411 = vmax.f32 %v409, %v410
  %v412 = vrot.slane %v411, 2
  %v413 = vmax.f32 %v411, %v412
  %v414 = vrot.slane %v413, 1
  %v415 = vmax.f32 %v413, %v414
  %v416 = vsel %vm233, %v113, -inf
  %v417 = vrot.slane %v416, 4
  %v418 = vmax.f32 %v416, %v417
  %v419 = vrot.slane %v418, 2
  %v420 = vmax.f32 %v418, %v419
  %v421 = vrot.slane %v420, 1
  %v422 = vmax.f32 %v420, %v421
  %v423 = vsel %vm233, %v114, -inf
  %v424 = vrot.slane %v423, 4
  %v425 = vmax.f32 %v423, %v424
  %v426 = vrot.slane %v425, 2
  %v427 = vmax.f32 %v425, %v426
  %v428 = vrot.slane %v427, 1
  %v429 = vmax.f32 %v427, %v428
  %v430 = vsel %vm233, %v116, -inf
  %v431 = vrot.slane %v430, 4
  %v432 = vmax.f32 %v430, %v431
  %v433 = vrot.slane %v432, 2
  %v434 = vmax.f32 %v432, %v433
  %v435 = vrot.slane %v434, 1
  %v436 = vmax.f32 %v434, %v435
  %v437 = vsel %vm233, %v117, -inf
  %v438 = vrot.slane %v437, 4
  %v439 = vmax.f32 %v437, %v438
  %v440 = vrot.slane %v439, 2
  %v441 = vmax.f32 %v439, %v440
  %v442 = vrot.slane %v441, 1
  %v443 = vmax.f32 %v441, %v442
  %v444 = vsel %vm233, %v119, -inf
  %v445 = vrot.slane %v444, 4
  %v446 = vmax.f32 %v444, %v445
  %v447 = vrot.slane %v446, 2
  %v448 = vmax.f32 %v446, %v447
  %v449 = vrot.slane %v448, 1
  %v450 = vmax.f32 %v448, %v449
  %v451 = vsel %vm233, %v120, -inf
  %v452 = vrot.slane %v451, 4
  %v453 = vmax.f32 %v451, %v452
  %v454 = vrot.slane %v453, 2
  %v455 = vmax.f32 %v453, %v454
  %v456 = vrot.slane %v455, 1
  %v457 = vmax.f32 %v455, %v456
  %v458 = vsel %vm233, %v122, -inf
  %v459 = vrot.slane %v458, 4
  %v460 = vmax.f32 %v458, %v459
  %v461 = vrot.slane %v460, 2
  %v462 = vmax.f32 %v460, %v461
  %v463 = vrot.slane %v462, 1
  %v464 = vmax.f32 %v462, %v463
  %v465 = vsel %vm233, %v123, -inf
  %v466 = vrot.slane %v465, 4
  %v467 = vmax.f32 %v465, %v466
  %v468 = vrot.slane %v467, 2
  %v469 = vmax.f32 %v467, %v468
  %v470 = vrot.slane %v469, 1
  %v471 = vmax.f32 %v469, %v470
  %v472 = vsel %vm233, %v125, -inf
  %v473 = vrot.slane %v472, 4
  %v474 = vmax.f32 %v472, %v473
  %v475 = vrot.slane %v474, 2
  %v476 = vmax.f32 %v474, %v475
  %v477 = vrot.slane %v476, 1
  %v478 = vmax.f32 %v476, %v477
  %v479 = vsel %vm233, %v126, -inf
  %v480 = vrot.slane %v479, 4
  %v481 = vmax.f32 %v479, %v480
  %v482 = vrot.slane %v481, 2
  %v483 = vmax.f32 %v481, %v482
  %v484 = vrot.slane %v483, 1
  %v485 = vmax.f32 %v483, %v484
  %v486 = vsel %vm233, %v128, -inf
  %v487 = vrot.slane %v486, 4
  %v488 = vmax.f32 %v486, %v487
  %v489 = vrot.slane %v488, 2
  %v490 = vmax.f32 %v488, %v489
  %v491 = vrot.slane %v490, 1
  %v492 = vmax.f32 %v490, %v491
  %v493 = vsel %vm233, %v129, -inf
  %v494 = vrot.slane %v493, 4
  %v495 = vmax.f32 %v493, %v494
  %v496 = vrot.slane %v495, 2
  %v497 = vmax.f32 %v495, %v496
  %v498 = vrot.slane %v497, 1
  %v499 = vmax.f32 %v497, %v498
  %v500 = vsel %vm233, %v131, -inf
  %v501 = vrot.slane %v500, 4
  %v502 = vmax.f32 %v500, %v501
  %v503 = vrot.slane %v502, 2
  %v504 = vmax.f32 %v502, %v503
  %v505 = vrot.slane %v504, 1
  %v506 = vmax.f32 %v504, %v505
  %v507 = vsel %vm233, %v132, -inf
  %v508 = vrot.slane %v507, 4
  %v509 = vmax.f32 %v507, %v508
  %v510 = vrot.slane %v509, 2
  %v511 = vmax.f32 %v509, %v510
  %v512 = vrot.slane %v511, 1
  %v513 = vmax.f32 %v511, %v512
  %v514 = vsel %vm233, %v134, -inf
  %v515 = vrot.slane %v514, 4
  %v516 = vmax.f32 %v514, %v515
  %v517 = vrot.slane %v516, 2
  %v518 = vmax.f32 %v516, %v517
  %v519 = vrot.slane %v518, 1
  %v520 = vmax.f32 %v518, %v519
  %v521 = vsel %vm233, %v135, -inf
  %v522 = vrot.slane %v521, 4
  %v523 = vmax.f32 %v521, %v522
  %v524 = vrot.slane %v523, 2
  %v525 = vmax.f32 %v523, %v524
  %v526 = vrot.slane %v525, 1
  %v527 = vmax.f32 %v525, %v526
  %v528 = vsel %vm233, %v137, -inf
  %v529 = vrot.slane %v528, 4
  %v530 = vmax.f32 %v528, %v529
  %v531 = vrot.slane %v530, 2
  %v532 = vmax.f32 %v530, %v531
  %v533 = vrot.slane %v532, 1
  %v534 = vmax.f32 %v532, %v533
  %v535 = vsel %vm233, %v138, -inf
  %v536 = vrot.slane %v535, 4
  %v537 = vmax.f32 %v535, %v536
  %v538 = vrot.slane %v537, 2
  %v539 = vmax.f32 %v537, %v538
  %v540 = vrot.slane %v539, 1
  %v541 = vmax.f32 %v539, %v540
  %v542 = vsel %vm233, %v140, -inf
  %v543 = vrot.slane %v542, 4
  %v544 = vmax.f32 %v542, %v543
  %v545 = vrot.slane %v544, 2
  %v546 = vmax.f32 %v544, %v545
  %v547 = vrot.slane %v546, 1
  %v548 = vmax.f32 %v546, %v547
  %v549 = vsel %vm233, %v141, -inf
  %v550 = vrot.slane %v549, 4
  %v551 = vmax.f32 %v549, %v550
  %v552 = vrot.slane %v551, 2
  %v553 = vmax.f32 %v551, %v552
  %v554 = vrot.slane %v553, 1
  %v555 = vmax.f32 %v553, %v554
  %v556 = vsel %vm233, %v143, -inf
  %v557 = vrot.slane %v556, 4
  %v558 = vmax.f32 %v556, %v557
  %v559 = vrot.slane %v558, 2
  %v560 = vmax.f32 %v558, %v559
  %v561 = vrot.slane %v560, 1
  %v562 = vmax.f32 %v560, %v561
  %v563 = vsel %vm233, %v144, -inf
  %v564 = vrot.slane %v563, 4
  %v565 = vmax.f32 %v563, %v564
  %v566 = vrot.slane %v565, 2
  %v567 = vmax.f32 %v565, %v566
  %v568 = vrot.slane %v567, 1
  %v569 = vmax.f32 %v567, %v568
  %v570 = vsel %vm233, %v146, -inf
  %v571 = vrot.slane %v570, 4
  %v572 = vmax.f32 %v570, %v571
  %v573 = vrot.slane %v572, 2
  %v574 = vmax.f32 %v572, %v573
  %v575 = vrot.slane %v574, 1
  %v576 = vmax.f32 %v574, %v575
  %v577 = vsel %vm233, %v147, -inf
  %v578 = vrot.slane %v577, 4
  %v579 = vmax.f32 %v577, %v578
  %v580 = vrot.slane %v579, 2
  %v581 = vmax.f32 %v579, %v580
  %v582 = vrot.slane %v581, 1
  %v583 = vmax.f32 %v581, %v582
  %v584 = vsel %vm233, %v149, -inf
  %v585 = vrot.slane %v584, 4
  %v586 = vmax.f32 %v584, %v585
  %v587 = vrot.slane %v586, 2
  %v588 = vmax.f32 %v586, %v587
  %v589 = vrot.slane %v588, 1
  %v590 = vmax.f32 %v588, %v589
  %v591 = vsel %vm233, %v150, -inf
  %v592 = vrot.slane %v591, 4
  %v593 = vmax.f32 %v591, %v592
  %v594 = vrot.slane %v593, 2
  %v595 = vmax.f32 %v593, %v594
  %v596 = vrot.slane %v595, 1
  %v597 = vmax.f32 %v595, %v596
  %v598 = vsel %vm233, %v152, -inf
  %v599 = vrot.slane %v598, 4
  %v600 = vmax.f32 %v598, %v599
  %v601 = vrot.slane %v600, 2
  %v602 = vmax.f32 %v600, %v601
  %v603 = vrot.slane %v602, 1
  %v604 = vmax.f32 %v602, %v603
  %v605 = vsel %vm233, %v153, -inf
  %v606 = vrot.slane %v605, 4
  %v607 = vmax.f32 %v605, %v606
  %v608 = vrot.slane %v607, 2
  %v609 = vmax.f32 %v607, %v608
  %v610 = vrot.slane %v609, 1
  %v611 = vmax.f32 %v609, %v610
  %v612 = vsel %vm233, %v155, -inf
  %v613 = vrot.slane %v612, 4
  %v614 = vmax.f32 %v612, %v613
  %v615 = vrot.slane %v614, 2
  %v616 = vmax.f32 %v614, %v615
  %v617 = vrot.slane %v616, 1
  %v618 = vmax.f32 %v616, %v617
  %v619 = vsel %vm233, %v156, -inf
  %v620 = vrot.slane %v619, 4
  %v621 = vmax.f32 %v619, %v620
  %v622 = vrot.slane %v621, 2
  %v623 = vmax.f32 %v621, %v622
  %v624 = vrot.slane %v623, 1
  %v625 = vmax.f32 %v623, %v624
  %v626 = vsel %vm233, %v158, -inf
  %v627 = vrot.slane %v626, 4
  %v628 = vmax.f32 %v626, %v627
  %v629 = vrot.slane %v628, 2
  %v630 = vmax.f32 %v628, %v629
  %v631 = vrot.slane %v630, 1
  %v632 = vmax.f32 %v630, %v631
  %v633 = vsel %vm233, %v159, -inf
  %v634 = vrot.slane %v633, 4
  %v635 = vmax.f32 %v633, %v634
  %v636 = vrot.slane %v635, 2
  %v637 = vmax.f32 %v635, %v636
  %v638 = vrot.slane %v637, 1
  %v639 = vmax.f32 %v637, %v638
  %v640 = vsel %vm233, %v161, -inf
  %v641 = vrot.slane %v640, 4
  %v642 = vmax.f32 %v640, %v641
  %v643 = vrot.slane %v642, 2
  %v644 = vmax.f32 %v642, %v643
  %v645 = vrot.slane %v644, 1
  %v646 = vmax.f32 %v644, %v645
  %v647 = vsel %vm233, %v162, -inf
  %v648 = vrot.slane %v647, 4
  %v649 = vmax.f32 %v647, %v648
  %v650 = vrot.slane %v649, 2
  %v651 = vmax.f32 %v649, %v650
  %v652 = vrot.slane %v651, 1
  %v653 = vmax.f32 %v651, %v652
  %v654 = vsel %vm233, %v164, -inf
  %v655 = vrot.slane %v654, 4
  %v656 = vmax.f32 %v654, %v655
  %v657 = vrot.slane %v656, 2
  %v658 = vmax.f32 %v656, %v657
  %v659 = vrot.slane %v658, 1
  %v660 = vmax.f32 %v658, %v659
  %v661 = vsel %vm233, %v165, -inf
  %v662 = vrot.slane %v661, 4
  %v663 = vmax.f32 %v661, %v662
  %v664 = vrot.slane %v663, 2
  %v665 = vmax.f32 %v663, %v664
  %v666 = vrot.slane %v665, 1
  %v667 = vmax.f32 %v665, %v666
  %v668 = vsel %vm233, %v167, -inf
  %v669 = vrot.slane %v668, 4
  %v670 = vmax.f32 %v668, %v669
  %v671 = vrot.slane %v670, 2
  %v672 = vmax.f32 %v670, %v671
  %v673 = vrot.slane %v672, 1
  %v674 = vmax.f32 %v672, %v673
  %v675 = vsel %vm233, %v168, -inf
  %v676 = vrot.slane %v675, 4
  %v677 = vmax.f32 %v675, %v676
  %v678 = vrot.slane %v677, 2
  %v679 = vmax.f32 %v677, %v678
  %v680 = vrot.slane %v679, 1
  %v681 = vmax.f32 %v679, %v680
  %vm746 = vcmask 1041409
  %v747 = vsel %vm746, %v254, %v240
  %vm748 = vcmask 1042434
  %v749 = vsel %vm748, %v268, %v747
  %vm750 = vcmask 1043459
  %v751 = vsel %vm750, %v282, %v749
  %vm752 = vcmask 1044484
  %v753 = vsel %vm752, %v296, %v751
  %vm754 = vcmask 1045509
  %v755 = vsel %vm754, %v310, %v753
  %vm756 = vcmask 1046534
  %v757 = vsel %vm756, %v324, %v755
  %vm758 = vcmask 1047559
  %v759 = vsel %vm758, %v338, %v757
  %v760 = vsel %vm746, %v261, %v247
  %v761 = vsel %vm748, %v275, %v760
  %v762 = vsel %vm750, %v289, %v761
  %v763 = vsel %vm752, %v303, %v762
  %v764 = vsel %vm754, %v317, %v763
  %v765 = vsel %vm756, %v331, %v764
  %v766 = vsel %vm758, %v345, %v765
  %v767 = vsel %vm746, %v366, %v352
  %v768 = vsel %vm748, %v380, %v767
  %v769 = vsel %vm750, %v394, %v768
  %v770 = vsel %vm752, %v408, %v769
  %v771 = vsel %vm754, %v422, %v770
  %v772 = vsel %vm756, %v436, %v771
  %v773 = vsel %vm758, %v450, %v772
  %v774 = vsel %vm746, %v373, %v359
  %v775 = vsel %vm748, %v387, %v774
  %v776 = vsel %vm750, %v401, %v775
  %v777 = vsel %vm752, %v415, %v776
  %v778 = vsel %vm754, %v429, %v777
  %v779 = vsel %vm756, %v443, %v778
  %v780 = vsel %vm758, %v457, %v779
  %v781 = vsel %vm746, %v478, %v464
  %v782 = vsel %vm748, %v492, %v781
  %v783 = vsel %vm750, %v506, %v782
  %v784 = vsel %vm752, %v520, %v783
  %v785 = vsel %vm754, %v534, %v784
  %v786 = vsel %vm756, %v548, %v785
  %v787 = vsel %vm758, %v562, %v786
  %v788 = vsel %vm746, %v485, %v471
  %v789 = vsel %vm748, %v499, %v788
  %v790 = vsel %vm750, %v513, %v789
  %v791 = vsel %vm752, %v527, %v790
  %v792 = vsel %vm754, %v541, %v791
  %v793 = vsel %vm756, %v555, %v792
  %v794 = vsel %vm758, %v569, %v793
  %v795 = vsel %vm746, %v590, %v576
  %v796 = vsel %vm748, %v604, %v795
  %v797 = vsel %vm750, %v618, %v796
  %v798 = vsel %vm752, %v632, %v797
  %v799 = vsel %vm754, %v646, %v798
  %v800 = vsel %vm756, %v660, %v799
  %v801 = vsel %vm758, %v674, %v800
  %v802 = vsel %vm746, %v597, %v583
  %v803 = vsel %vm748, %v611, %v802
  %v804 = vsel %vm750, %v625, %v803
  %v805 = vsel %vm752, %v639, %v804
  %v806 = vsel %vm754, %v653, %v805
  %v807 = vsel %vm756, %v667, %v806
  %v808 = vsel %vm758, %v681, %v807
  %817 = vst [vmem:[%s1] sm:$0xff] %v759
  %818 = vst [vmem:[%s1 + $0x8] sm:$0xff] %v766
  %819 = vst [vmem:[%s1 + $0x10] sm:$0xff] %v773
  %820 = vst [vmem:[%s1 + $0x18] sm:$0xff] %v780
  %821 = vst [vmem:[%s1 + $0x20] sm:$0xff] %v787
  %822 = vst [vmem:[%s1 + $0x28] sm:$0xff] %v794
  %823 = vst [vmem:[%s1 + $0x30] sm:$0xff] %v801
  %824 = vst [vmem:[%s1 + $0x38] sm:$0xff] %v808
  // Predicated region
  $region6: #{undirectional_pooling.1} parent=0 // pred_check
    _
  $region7: #{undirectional_pooling.1} parent=0 // pred_check_branch
    %826 = sbr.rel (0) target = $region9
  $region8: #{undirectional_pooling.1} parent=0 // pred_region
    _
  $region9: #{undirectional_pooling.1} parent=0 // pred_fallthru
    _
  // Predicated region
  $region10: #{undirectional_pooling.1} parent=0 // pred_check
    _
  $region11: #{undirectional_pooling.1} parent=0 // pred_check_branch
    %828 = sbr.rel (0) target = $region13
  $region12: #{undirectional_pooling.1} parent=0 // pred_region
    _
  $region13: #{undirectional_pooling.1} parent=0 // pred_fallthru
    _

</llo_original>
